<compile_context>
chip_gen: v6e
topology: v6e:2x2x1
jax: 0.10.0
libtpu: 0.0.40
codegen_flags: <defaults>
</compile_context>

<pallas_src>
import functools

import jax
import jax.numpy as jnp
from jax import lax
from jax.experimental import pallas as pl
from jax.experimental.pallas import tpu as pltpu


def _block_kernel(x_ref, wt_ref, o_ref, inv_ref, *, normalize_input: bool):
    """One (tile_b, tile_out) output tile.

    x_ref:   (tile_b, in_dim)     native dtype, raw (un-normalized) input
    wt_ref:  (in_dim, tile_out)   native dtype, pre-transposed weight
    o_ref:   (tile_b, tile_out)
    inv_ref: (tile_b, 1) f32      per-row 1/||x|| cache for one batch tile
    """
    if normalize_input:
        # Compute the inverse norm once per batch tile and cache it; the
        # out_dim grid axis is "arbitrary" so the j==0 guard is valid.
        @pl.when(pl.program_id(1) == 0)
        def _():
            xf = x_ref[...].astype(jnp.float32)
            sq = jnp.sum(xf * xf, axis=1, keepdims=True)       # XLU reduce
            # F.normalize clamp: x / max(||x||, 1e-12) == x * rsqrt(max(sq,1e-24))
            inv_ref[...] = lax.rsqrt(jnp.maximum(sq, 1e-24))   # EUP slot

    # nn.Linear (bias=False): y = x @ W^T.  Weight already (in_dim, out_dim),
    # so this is a plain K-contraction feeding the MXU; accumulate in f32.
    y = lax.dot_general(
        x_ref[...], wt_ref[...],
        dimension_numbers=(((1,), (0,)), ((), ())),
        preferred_element_type=jnp.float32,
    )
    y = jnp.maximum(y, 0.0)                                    # ReLU
    if normalize_input:
        # relu(x @ W) * inv == relu((x * inv) @ W)  (inv > 0), but scaling the
        # (tile_b, tile_out) output is cheaper than scaling the x tile.
        y = y * inv_ref[...]
    o_ref[...] = y.astype(o_ref.dtype)


def _round_down(v: int, align: int) -> int:
    return max((v // align) * align, align)


def _pick_tiles(B, out_p, in_dim, x_bytes, w_bytes, o_bytes, budget):
    """Largest (tile_b, tile_out) whose double-buffered footprint fits `budget`."""

    def footprint(tb, to):
        return 2 * (tb * in_dim * x_bytes + in_dim * to * w_bytes
                    + tb * to * o_bytes)

    tb = B if B <= 512 else 512          # multiple of 8 (or the full dim)
    to = out_p if out_p <= 512 else 512  # out_p is already a multiple of 128
    while footprint(tb, to) > budget:
        if to > 128 and to >= tb:
            to = _round_down(to // 2, 128)
        elif tb > 8:
            tb = _round_down(tb // 2, 8)
        else:
            break  # TODO(synk): K-split fallback for very large in_dim
    return tb, to


def block_forward(x, weight, *, normalize_input: bool, ff: bool):
    """Pallas implementation of Block.forward.

    x:      (B, in_dim)
    weight: (out_dim, in_dim)   (PyTorch nn.Linear layout)
    returns (B, out_dim)
    """
    B, in_dim = x.shape
    out_dim, in_dim_w = weight.shape
    assert in_dim == in_dim_w

    x_item = jnp.dtype(x.dtype).itemsize
    w_item = jnp.dtype(weight.dtype).itemsize
    o_item = x_item

    # One-time weight prep (parameter-side cost): transpose to (in_dim, out)
    # and zero-pad out_dim to a multiple of 128 so the output is lane-dense
    # (full vst stores, full MXU N columns).  Padded columns produce 0s.
    out_p = ((out_dim + 127) // 128) * 128
    wt = weight.T
    if out_p != out_dim:
        wt = jnp.pad(wt, ((0, 0), (0, out_p - out_dim)))

    # VMEM-aware tiling (v5e/v6e: 128 MiB, v7x: 64 MiB physical VMEM).
    try:
        vmem_cap = pltpu.get_tpu_info().vmem_capacity_bytes
    except Exception:  # pragma: no cover - conservative fallback (v7x-sized)
        vmem_cap = 64 << 20
    budget = int(vmem_cap * 0.7)
    tile_b, tile_out = _pick_tiles(B, out_p, in_dim, x_item, w_item, o_item,
                                   budget)

    grid_b = pl.cdiv(B, tile_b)
    grid_o = pl.cdiv(out_p, tile_out)

    footprint = 2 * (tile_b * in_dim * x_item + in_dim * tile_out * w_item
                     + tile_b * tile_out * o_item)
    vmem_limit = int(min(vmem_cap - (4 << 20),
                         max(32 << 20, footprint + (8 << 20))))

    # x streams once (its block index is constant across the inner out_dim
    # axis); the weight is re-streamed once per batch tile.
    cost = pl.CostEstimate(
        flops=2 * B * in_dim * out_p,
        transcendentals=B if normalize_input else 0,
        bytes_accessed=(x.size * x_item
                        + wt.size * w_item * grid_b
                        + B * out_p * o_item),
    )

    kernel = functools.partial(_block_kernel, normalize_input=normalize_input)

    # Batch axis "parallel" (megacore-shardable on v7x); out_dim axis must be
    # "arbitrary" when the per-batch-tile norm cache is in use.
    out_sem = "arbitrary" if normalize_input else "parallel"

    out = pl.pallas_call(
        kernel,
        out_shape=jax.ShapeDtypeStruct((B, out_p), x.dtype),
        grid_spec=pltpu.PrefetchScalarGridSpec(
            num_scalar_prefetch=0,
            grid=(grid_b, grid_o),
            in_specs=[
                # x tile: varies only with the batch axis (not re-DMA'd per j).
                pl.BlockSpec((tile_b, in_dim), lambda i, j: (i, 0)),
                # pre-transposed weight tile: varies only with the out axis.
                pl.BlockSpec((in_dim, tile_out), lambda i, j: (0, j)),
            ],
            out_specs=pl.BlockSpec((tile_b, tile_out), lambda i, j: (i, j)),
            scratch_shapes=[pltpu.VMEM((tile_b, 1), jnp.float32)],
        ),
        compiler_params=pltpu.CompilerParams(
            dimension_semantics=("parallel", out_sem),
            vmem_limit_bytes=vmem_limit,
        ),
        cost_estimate=cost,
    )(x, wt)

    if out_p != out_dim:
        out = out[:, :out_dim]
    if ff:
        # PyTorch .detach(): forward values identical, gradients stopped.
        out = lax.stop_gradient(out)
    return out


def _reference(x, weight, normalize_input):
    xf = x.astype(jnp.float32)
    if normalize_input:
        norm = jnp.sqrt(jnp.sum(xf * xf, axis=1, keepdims=True))
        xf = xf / jnp.maximum(norm, 1e-12)
    y = xf @ weight.astype(jnp.float32).T
    return jnp.maximum(y, 0.0)


if __name__ == "__main__":
    key = jax.random.PRNGKey(0)

    # (batch, in_dim, out_dim, normalize_input, ff)
    cases = [
        (8, 32, 64, True, True),      # module's small case (output padded to 128)
        (8, 32, 64, False, False),    # no input normalization
        (512, 128, 384, True, True),  # exercises 2-D tiling + norm cache reuse
    ]

    for B, IN_DIM, OUT_DIM, norm_in, ff in cases:
        key, kx, kw = jax.random.split(key, 3)
        x = jax.random.normal(kx, (B, IN_DIM), dtype=jnp.float32)
        bound = 1.0 / (IN_DIM ** 0.5)
        weight = jax.random.uniform(
            kw, (OUT_DIM, IN_DIM), minval=-bound, maxval=bound,
            dtype=jnp.float32,
        )

        out = block_forward(x, weight, normalize_input=norm_in, ff=ff)
        out = jax.block_until_ready(out)

        ref = _reference(x, weight, norm_in)
        assert out.shape == (B, OUT_DIM)
        assert jnp.allclose(out, ref, atol=1e-5, rtol=1e-4), (
            f"mismatch vs reference at ({B},{IN_DIM},{OUT_DIM}), "
            f"normalize_input={norm_in}"
        )

    print("KERNEL_OK")
</pallas_src>

<mosaic_0001>
module attributes {stable_mosaic.version = 11 : i64} {
  func.func @_block_kernel(%arg0: i32, %arg1: i32, %arg2: memref<8x32xf32, #tpu.memory_space<vmem>>, %arg3: memref<32x128xf32, #tpu.memory_space<vmem>>, %arg4: memref<8x128xf32, #tpu.memory_space<vmem>>, %arg5: memref<8x1xf32, #tpu.memory_space<vmem>>) attributes {dimension_semantics = [#tpu.dimension_semantics<parallel>, #tpu.dimension_semantics<arbitrary>], iteration_bounds = array<i64: 1, 1>, scalar_prefetch = 0 : i64, scratch_operands = 1 : i64, tpu.core_type = #tpu.core_type<tc>, window_params = [{transform_indices = @transform_0, window_bounds = array<i64: 8, 32>}, {transform_indices = @transform_1, window_bounds = array<i64: 32, 128>}, {transform_indices = @transform_2, window_bounds = array<i64: 8, 128>}]} {
    %c0_i32 = arith.constant 0 : i32
    %0 = arith.cmpi eq, %arg1, %c0_i32 : i32
    %1 = arith.extui %0 : i1 to i32
    %c0_i32_0 = arith.constant 0 : i32
    %2 = arith.cmpi ne, %1, %c0_i32_0 : i32
    scf.if %2 {
      %c0_9 = arith.constant 0 : index
      %c0_10 = arith.constant 0 : index
      %12 = vector.load %arg2[%c0_9, %c0_10] : memref<8x32xf32, #tpu.memory_space<vmem>>, vector<8x32xf32>
      %13 = arith.mulf %12, %12 : vector<8x32xf32>
      %cst_11 = arith.constant dense<0.000000e+00> : vector<8xf32>
      %14 = vector.multi_reduction <add>, %13, %cst_11 [1] : vector<8x32xf32> to vector<8xf32>
      %15 = vector.shape_cast %14 : vector<8xf32> to vector<8x1xf32>
      %cst_12 = arith.constant 1.000000e-24 : f32
      %16 = vector.broadcast %cst_12 : f32 to vector<8x1xf32>
      %17 = arith.maximumf %15, %16 : vector<8x1xf32>
      %18 = math.rsqrt %17 : vector<8x1xf32>
      %c0_13 = arith.constant 0 : index
      %c0_14 = arith.constant 0 : index
      %19 = vector.load %arg5[%c0_13, %c0_14] : memref<8x1xf32, #tpu.memory_space<vmem>>, vector<8x1xf32>
      tpu.vector_store %arg5[%c0_13, %c0_14], %18 {strides = array<i32>} : memref<8x1xf32, #tpu.memory_space<vmem>>, vector<8x1xf32>,
    } else {
    }
    %c0 = arith.constant 0 : index
    %c0_1 = arith.constant 0 : index
    %3 = vector.load %arg2[%c0, %c0_1] : memref<8x32xf32, #tpu.memory_space<vmem>>, vector<8x32xf32>
    %c0_2 = arith.constant 0 : index
    %c0_3 = arith.constant 0 : index
    %4 = vector.load %arg3[%c0_2, %c0_3] : memref<32x128xf32, #tpu.memory_space<vmem>>, vector<32x128xf32>
    %cst = arith.constant dense<0.000000e+00> : vector<8x128xf32>
    %5 = tpu.matmul %3, %4, %cst {dimension_numbers = #tpu.dot_dimension_numbers<[1], [0], [0], [1], [0, 0, 1, 1], [], []>} : vector<8x32xf32>, vector<32x128xf32>, vector<8x128xf32> -> vector<8x128xf32>
    %cst_4 = arith.constant 0.000000e+00 : f32
    %6 = vector.broadcast %cst_4 : f32 to vector<8x128xf32>
    %7 = arith.maximumf %5, %6 : vector<8x128xf32>
    %c0_5 = arith.constant 0 : index
    %c0_6 = arith.constant 0 : index
    %8 = vector.load %arg5[%c0_5, %c0_6] : memref<8x1xf32, #tpu.memory_space<vmem>>, vector<8x1xf32>
    %9 = vector.broadcast %8 : vector<8x1xf32> to vector<8x128xf32>
    %10 = arith.mulf %7, %9 : vector<8x128xf32>
    %c0_7 = arith.constant 0 : index
    %c0_8 = arith.constant 0 : index
    %11 = vector.load %arg4[%c0_7, %c0_8] : memref<8x128xf32, #tpu.memory_space<vmem>>, vector<8x128xf32>
    tpu.vector_store %arg4[%c0_7, %c0_8], %10 {strides = array<i32>} : memref<8x128xf32, #tpu.memory_space<vmem>>, vector<8x128xf32>,
    return
  }
  func.func @transform_0(%arg0: i32, %arg1: i32) -> (i32, i32) {
    %c0_i32 = arith.constant 0 : i32
    %c0_i32_0 = arith.constant 0 : i32
    return %arg0, %c0_i32 : i32, i32
  }
  func.func @transform_1(%arg0: i32, %arg1: i32) -> (i32, i32) {
    %c0_i32 = arith.constant 0 : i32
    %c0_i32_0 = arith.constant 0 : i32
    return %c0_i32, %arg1 : i32, i32
  }
  func.func @transform_2(%arg0: i32, %arg1: i32) -> (i32, i32) {
    %c0_i32 = arith.constant 0 : i32
    return %arg0, %arg1 : i32, i32
  }
}

</mosaic_0001>

<llo_original>
// kernel: tpu_custom_call.1
$region0: #{tpu_custom_call.1}
  #allocation0 [shape = 'u32[]', space=smem, size = 0x4, offset = 0x4, fixed_abs, tag = 'smem constant byte address 0x4 - core index']
  #allocation1 [shape = 'u32[144,128]{1,0:T(1,128)}', space=vmem, size = 0x12000, scoped, tag = 'internal scratch']
  #allocation2 [shape = 'f32[8,1]{1,0:T(8,128)}', space=vmem, size = 0x1000, scoped, tag = 'scratch operand']
  %s0 = inlined_call_operand.hbm [shape: f32[8,32], index: 0, kind: input, shape index: {}]
  %s1 = inlined_call_operand.hbm [shape: f32[32,128], index: 1, kind: input, shape index: {}]
  %s2 = inlined_call_operand.hbm [shape: f32[8,128], index: 2, kind: output, shape index: {}]
  %s3 = sld [smem:[#allocation0]]
  $region30: #{tpu_custom_call.1} parent=0
    _
  %s5 = ssub.s32 1, %s3
  %s6 = scalar_select 0, %s5, %s3
  $region1: #{tpu_custom_call.1} parent=0
    #allocation3 [shape = 'u8[4096]{0}', space=vmem, size = 0x1000, scoped, tag = 'input window, operand 0, single buffered']
    #allocation4 [shape = 's32[1]{0}', space=sflag, size = 0x4, scoped, tag = 'scoped memory for tpu_custom_call.1']
    #allocation5 [shape = 's32[1]{0}', space=sflag, size = 0x4, scoped, tag = 'scoped memory for tpu_custom_call.1']
    #allocation6 [shape = 'u8[16384]{0}', space=vmem, size = 0x4000, scoped, tag = 'input window, operand 1, single buffered']
    #allocation7 [shape = 's32[1]{0}', space=sflag, size = 0x4, scoped, tag = 'scoped memory for tpu_custom_call.1']
    #allocation8 [shape = 'u8[4096]{0}', space=vmem, size = 0x1000, scoped, tag = 'output window, operand 0, single buffered']
    %7 = vsyncpa [#allocation4], 0
    %8 = vsyncpa [#allocation7], 0
    %9 = vsyncpa [#allocation5], 0
    // Predicated region
    $region2: #{tpu_custom_call.1} parent=1 // pred_check
      _
    $region3: #{tpu_custom_call.1} parent=1 // pred_check_branch
      %11 = sbr.rel (0) target = $region5
    $region4: #{tpu_custom_call.1} parent=1 // pred_region
      %s13 = ssub.s32 128, 128
      %14 = vsyncadd [#allocation4], %s13
      %s16 = sshll.u32 [#allocation3], 4
      %s17 = int_to_ptr.vmem [resolvable:$true] %s16
      %19 = dma.hbm_to_vmem [thread:$0]  %s0, 128, %s17, [#allocation4]
    $region5: #{tpu_custom_call.1} parent=1 // pred_fallthru
      _
    // Predicated region
    $region6: #{tpu_custom_call.1} parent=1 // pred_check
      _
    $region7: #{tpu_custom_call.1} parent=1 // pred_check_branch
      %21 = sbr.rel (0) target = $region9
    $region8: #{tpu_custom_call.1} parent=1 // pred_region
      %s23 = ssub.s32 512, 512
      %24 = vsyncadd [#allocation7], %s23
      %s25 = sshll.u32 [#allocation6], 4
      %s26 = int_to_ptr.vmem [resolvable:$true] %s25
      %31 = dma.hbm_to_vmem [thread:$0]  %s1, 512, %s26, [#allocation7], 128, 128, 8
    $region9: #{tpu_custom_call.1} parent=1 // pred_fallthru
      _
    // Predicated region
    $region10: #{tpu_custom_call.1} parent=1 // pred_check
      _
    $region11: #{tpu_custom_call.1} parent=1 // pred_check_branch
      %33 = sbr.rel (0) target = $region13
    $region12: #{tpu_custom_call.1} parent=1 // pred_region
      %34 = dma.done [#allocation4], 128
    $region13: #{tpu_custom_call.1} parent=1 // pred_fallthru
      _
    // Predicated region
    $region14: #{tpu_custom_call.1} parent=1 // pred_check
      _
    $region15: #{tpu_custom_call.1} parent=1 // pred_check_branch
      %36 = sbr.rel (0) target = $region17
    $region16: #{tpu_custom_call.1} parent=1 // pred_region
      %37 = dma.done [#allocation7], 512
    $region17: #{tpu_custom_call.1} parent=1 // pred_fallthru
      _
    %p38 = scmp.eq.s32.totalorder 0, 0
    // Predicated region
    $region18: #{tpu_custom_call.1} parent=1 // pred_check
      %p39 = pneg %p38
    $region19: #{tpu_custom_call.1} parent=1 // pred_check_branch
      %41 = sbr.rel (%p39) target = $region21
    $region20: #{tpu_custom_call.1} parent=1 // pred_region
      %v42 = vld [vmem:[#allocation3] sm:$0xff]
      %v43 = vmul.f32 %v42, %v42
      %vm44 = vcmask 261120
      %v45 = vsel %vm44, %v43, 0.0
      %46 = vadd.xlane.f32.xlu0 %v45
      %v47 = vpop.xlane.xlu0 %46
      %v48 = vmax.f32 %v47, 1e-24
      %v49 = vrsqrt.pop %v48
      %vm50 = vcmask 7168
      %51 = vst.msk [vmem:[#allocation2] sm:$0xff] %vm50, %v49
    $region21: #{tpu_custom_call.1} parent=1 // pred_fallthru
      _
    %v52 = vld [vmem:[#allocation3] sm:$0xff]
    %v53 = vld [vmem:[#allocation6] sm:$0xff]
    %v54 = vld [vmem:[#allocation6 + $0x8] sm:$0xff]
    %v55 = vld [vmem:[#allocation6 + $0x10] sm:$0xff]
    %v56 = vld [vmem:[#allocation6 + $0x18] sm:$0xff]
    %vm57 = vcmask 261120
    %v59 = vsel %vm57, %v52, 0
    %61 = vmatprep.subr.mxu0 0.0
    %62 = vmatpush1.msra.mxu0 0.0
    %63 = vmatprep.subr.mxu0 0.0
    %64 = vmatpush1.msra.mxu0 0.0
    %65 = vmatprep.subr.mxu0 0.0
    %66 = vmatpush1.msra.mxu0 0.0
    %67 = vmatprep.subr.mxu0 0.0
    %68 = vmatpush1.msra.mxu0 0.0
    %69 = vmatprep.subr.mxu0 0.0
    %70 = vmatpush1.msra.mxu0 0.0
    %71 = vmatprep.subr.mxu0 0.0
    %72 = vmatpush1.msra.mxu0 0.0
    %73 = vmatprep.subr.mxu0 0.0
    %74 = vmatpush1.msra.mxu0 0.0
    %75 = vmatprep.subr.mxu0 0.0
    %76 = vmatpush1.msra.mxu0 0.0
    %77 = vmatprep.subr.mxu0 0.0
    %78 = vmatpush1.msra.mxu0 0.0
    %79 = vmatprep.subr.mxu0 0.0
    %80 = vmatpush1.msra.mxu0 0.0
    %81 = vmatprep.subr.mxu0 0.0
    %82 = vmatpush1.msra.mxu0 0.0
    %83 = vmatprep.subr.mxu0 0.0
    %84 = vmatpush1.msra.mxu0 0.0
    %85 = vmatprep.subr.mxu0 0.0
    %86 = vmatpush1.msra.mxu0 %v56
    %87 = vmatprep.subr.mxu0 0.0
    %88 = vmatpush1.msra.mxu0 %v55
    %89 = vmatprep.subr.mxu0 0.0
    %90 = vmatpush1.msra.mxu0 %v54
    %91 = vmatprep.subr.mxu0 0.0
    %92 = vmatpush1.msra.mxu0 %v53
    %93 = vmatprep.subr.mxu0 0.0
    %94 = vmatpush2.msra.mxu0 0.0
    %95 = vmatprep.subr.mxu0 0.0
    %96 = vmatpush2.msra.mxu0 0.0
    %97 = vmatprep.subr.mxu0 0.0
    %98 = vmatpush2.msra.mxu0 0.0
    %99 = vmatprep.subr.mxu0 0.0
    %100 = vmatpush2.msra.mxu0 0.0
    %101 = vmatprep.subr.mxu0 0.0
    %102 = vmatpush2.msra.mxu0 0.0
    %103 = vmatprep.subr.mxu0 0.0
    %104 = vmatpush2.msra.mxu0 0.0
    %105 = vmatprep.subr.mxu0 0.0
    %106 = vmatpush2.msra.mxu0 0.0
    %107 = vmatprep.subr.mxu0 0.0
    %108 = vmatpush2.msra.mxu0 0.0
    %109 = vmatprep.subr.mxu0 0.0
    %110 = vmatpush2.msra.mxu0 0.0
    %111 = vmatprep.subr.mxu0 0.0
    %112 = vmatpush2.msra.mxu0 0.0
    %113 = vmatprep.subr.mxu0 0.0
    %114 = vmatpush2.msra.mxu0 0.0
    %115 = vmatprep.subr.mxu0 0.0
    %116 = vmatpush2.msra.mxu0 0.0
    %117 = vmatprep.subr.mxu0 0.0
    %118 = vmatpush2.msra.mxu0 0.0
    %119 = vmatprep.subr.mxu0 0.0
    %120 = vmatpush2.msra.mxu0 0.0
    %121 = vmatprep.subr.mxu0 0.0
    %122 = vmatpush2.msra.mxu0 0.0
    %123 = vmatprep.subr.mxu0 0.0
    %124 = vmatpush2.msra.mxu0 0.0
    %125 = vmatprep.mubr.f32.mxu0 0.0
    %126 = vmatmul.mubr.f32.gmra.mxu0 %v59
    %v127 = vpop.f32.mrf.mxu0
    %v128 = vadd.f32 0.0, %v127
    %v129 = vpop.f32.mrf.mxu0
    %130 = vdwg.mxu0
    %v131 = vmax.f32 %v128, 0.0
    %v132 = vld [vmem:[#allocation2] sm:$0xff]
    %134 = vset.pattern.permute.xlu0 0
    %135 = vperm.xlu0 %134, %v132
    %v136 = vpop.permute.xlu0 %135
    %v138 = vmul.f32 %v131, %v136
    %139 = vst [vmem:[#allocation8] sm:$0xff] %v138
    // Predicated region
    $region22: #{tpu_custom_call.1} parent=1 // pred_check
      _
    $region23: #{tpu_custom_call.1} parent=1 // pred_check_branch
      %141 = sbr.rel (0) target = $region25
    $region24: #{tpu_custom_call.1} parent=1 // pred_region
      %s143 = ssub.s32 128, 128
      %144 = vsyncadd [#allocation5], %s143
      %s146 = sshll.u32 [#allocation8], 4
      %s147 = int_to_ptr.vmem [resolvable:$true] %s146
      %149 = dma.vmem_to_hbm [thread:$0]  %s147, 128, %s2, [#allocation5]
    $region25: #{tpu_custom_call.1} parent=1 // pred_fallthru
      _
    // Predicated region
    $region26: #{tpu_custom_call.1} parent=1 // pred_check
      _
    $region27: #{tpu_custom_call.1} parent=1 // pred_check_branch
      %151 = sbr.rel (0) target = $region29
    $region28: #{tpu_custom_call.1} parent=1 // pred_region
      %152 = dma.done [#allocation5], 128
    $region29: #{tpu_custom_call.1} parent=1 // pred_fallthru
      _
    %153 = vsyncpa [#allocation4], 1
    %154 = vsyncpa [#allocation7], 1
    %155 = vsyncpa [#allocation5], 1

</llo_original>
